<compile_context>
chip_gen: v7x
topology: tpu7x:2x2x1
jax: 0.10.0
libtpu: 0.0.40
codegen_flags: <defaults>
</compile_context>

<pallas_src>
import functools
import math

import jax
import jax.numpy as jnp
from jax.experimental import pallas as pl
from jax.experimental.pallas import tpu as pltpu


def _chip_tuning():
    """Per-generation (block_budget_bytes, tensorcores sharing the grid)."""
    kind = ""
    try:
        kind = jax.devices()[0].device_kind.lower()
    except Exception:
        pass
    if "v6" in kind:        # v6e: 1.4 TB/s HBM, 128 MiB VMEM -> bigger blocks are free
        return (4 << 20), 1
    if "7" in kind:         # v7x: 3.2 TB/s HBM, 64 MiB VMEM, 2 TCs share the grid
        return (4 << 20), 2
    return (2 << 20), 1     # v5e / unknown: stay inside the 16 MiB scoped default


def _pick_row_tile(total_rows, elems_per_row, itemsize, row_multiple,
                   budget_bytes, num_cores):
    """Row tile sized against the per-block VMEM budget.

    Partial blocks keep the sublane axis a multiple of `row_multiple` (the
    (8,128) rule); a forced split / even step count is only applied on
    multi-TensorCore (v7x) parts, where the parallel grid axis is sharded.
    """
    row_bytes = max(1, elems_per_row * itemsize)
    t = min(total_rows, max(row_multiple, budget_bytes // row_bytes))
    if t >= total_rows:
        if num_cores > 1 and total_rows >= num_cores * row_multiple:
            t = pl.cdiv(total_rows, num_cores)      # let both v7x TCs work
        else:
            return total_rows                       # one full-extent block
    if t < total_rows:
        t = max(row_multiple, (t // row_multiple) * row_multiple)
        t = min(t, total_rows)
    if t == total_rows or num_cores <= 1:
        return t
    # Prefer a step count that is a multiple of the TC count (v7x).
    steps = pl.cdiv(total_rows, t)
    if steps % num_cores:
        steps = pl.cdiv(steps, num_cores) * num_cores
        cand = pl.cdiv(total_rows, steps)
        cand = max(row_multiple, (cand // row_multiple) * row_multiple)
        if 0 < cand <= t:
            t = cand
    return t


def _sigmoid_f32(g):
    # sigmoid(g) == 0.5 * (tanh(g/2) + 1): tanh goes to the EUP slot, avoids
    # the multi-op VPU divide and the exp(-g) overflow of 1/(1+exp(-g)).
    return 0.5 * (jnp.tanh(0.5 * g) + 1.0)


def _glu_split_kernel(a_ref, g_ref, o_ref):
    """a / gates arrive pre-split by the BlockSpec DMA; pure elementwise body."""
    sig = _sigmoid_f32(g_ref[...].astype(jnp.float32))
    o_ref[...] = (a_ref[...] * sig.astype(o_ref.dtype)).astype(o_ref.dtype)


def _glu_folded_kernel(x_ref, o_ref, *, half):
    """Lane-dense path for small unaligned last-dim splits.

    x_ref: (t, 128) with r = 128 // (2*half) original rows folded per slab row,
    each group laid out as [a(half) | g(half)].  Output: (t, 64) compacted.
    """
    n = x_ref.shape[-1]                                   # 128 (static)
    x = x_ref[...].astype(jnp.float32)
    g = pltpu.roll(x, shift=n - half, axis=1)             # g[l] = x[l + half]
    y = x * _sigmoid_f32(g)                               # valid where (l % 2h) < h
    lane = jax.lax.broadcasted_iota(jnp.int32, y.shape, 1)
    width = 2 * half
    while width < n:                                      # log2(r) static steps
        c = width // 2
        rolled = pltpu.roll(y, shift=n - c, axis=1)       # rolled[l] = y[l + c]
        pos = lane % (2 * width)
        y = jnp.where((pos >= c) & (pos < width), rolled, y)
        width *= 2
    o_ref[...] = y[:, : n // 2].astype(o_ref.dtype)


def _glu_lastdim_kernel(x_ref, o_ref):
    """Fallback: full-row load, split in kernel (rare unaligned shapes)."""
    d = o_ref.shape[-1]
    a = x_ref[:, :d]
    sig = _sigmoid_f32(x_ref[:, d:].astype(jnp.float32))
    o_ref[...] = (a * sig.astype(o_ref.dtype)).astype(o_ref.dtype)


@functools.partial(jax.jit, static_argnames=("dim",))
def glu(x, dim=-1):
    """Gated Linear Unit along `dim` (size along that axis must be even)."""
    ndim = x.ndim
    axis = dim % ndim
    two_d = x.shape[axis]
    assert two_d % 2 == 0, "GLU requires an even size along the split dim"
    d = two_d // 2
    outer = math.prod(x.shape[:axis])
    inner = math.prod(x.shape[axis + 1:])
    itemsize = jnp.dtype(x.dtype).itemsize
    out_shape_nd = x.shape[:axis] + (d,) + x.shape[axis + 1:]
    half_w = d * inner                       # contiguous width of each half

    budget, num_cores = _chip_tuning()
    out_elems = outer * half_w
    cost = pl.CostEstimate(
        flops=4 * out_elems,
        transcendentals=out_elems,
        bytes_accessed=3 * out_elems * itemsize,
    )
    cparams = pltpu.CompilerParams(
        dimension_semantics=("parallel",),
        vmem_limit_bytes=6 * budget + (4 << 20),
    )

    if half_w % 128 == 0:
        # Lane-aligned halves (covers both NCHW channel splits with
        # d*H*W % 128 == 0 and aligned last-dim splits): DMA delivers the two
        # halves pre-split via the column block index; fully dense loads/stores.
        x2 = x.reshape(outer, 2 * half_w)
        t = _pick_row_tile(outer, half_w, itemsize, 8, budget, num_cores)
        out2 = pl.pallas_call(
            _glu_split_kernel,
            out_shape=jax.ShapeDtypeStruct((outer, half_w), x.dtype),
            grid_spec=pltpu.PrefetchScalarGridSpec(
                num_scalar_prefetch=0,
                grid=(pl.cdiv(outer, t),),
                in_specs=[
                    pl.BlockSpec((t, half_w), lambda i: (i, 0)),
                    pl.BlockSpec((t, half_w), lambda i: (i, 1)),
                ],
                out_specs=pl.BlockSpec((t, half_w), lambda i: (i, 0)),
            ),
            compiler_params=cparams,
            cost_estimate=cost,
        )(x2, x2)
        return out2.reshape(out_shape_nd)

    if inner == 1 and 128 % (2 * d) == 0 and outer % (128 // (2 * d)) == 0:
        # Small unaligned last-dim split (e.g. W=16 -> d=8): fold rows into a
        # 128-wide lane-dense slab; extract/compact with XLU rolls in-kernel.
        r = 128 // (2 * d)
        rows = outer // r
        xf = x.reshape(rows, 128)
        t = _pick_row_tile(rows, 128, itemsize, 8, budget, num_cores)
        outf = pl.pallas_call(
            functools.partial(_glu_folded_kernel, half=d),
            out_shape=jax.ShapeDtypeStruct((rows, 64), x.dtype),
            grid_spec=pltpu.PrefetchScalarGridSpec(
                num_scalar_prefetch=0,
                grid=(pl.cdiv(rows, t),),
                in_specs=[pl.BlockSpec((t, 128), lambda i: (i, 0))],
                out_specs=pl.BlockSpec((t, 64), lambda i: (i, 0)),
            ),
            compiler_params=cparams,
            cost_estimate=cost,
        )(xf)
        return outf.reshape(out_shape_nd)

    if inner > 1:
        # Channel-style split whose half width is not 128-aligned: squeezed-axis
        # split over (outer, 2, d, inner) (block's last two dims are full ->
        # always legal); still no transpose anywhere.
        x4 = x.reshape(outer, 2, d, inner)
        t = _pick_row_tile(outer, half_w, itemsize, 1, budget, num_cores)
        out3 = pl.pallas_call(
            _glu_split_kernel,
            out_shape=jax.ShapeDtypeStruct((outer, d, inner), x.dtype),
            grid_spec=pltpu.PrefetchScalarGridSpec(
                num_scalar_prefetch=0,
                grid=(pl.cdiv(outer, t),),
                in_specs=[
                    pl.BlockSpec((t, None, d, inner), lambda i: (i, 0, 0, 0)),
                    pl.BlockSpec((t, None, d, inner), lambda i: (i, 1, 0, 0)),
                ],
                out_specs=pl.BlockSpec((t, d, inner), lambda i: (i, 0, 0)),
            ),
            compiler_params=cparams,
            cost_estimate=cost,
        )(x4, x4)
        return out3.reshape(out_shape_nd)

    # Last-dim split, neither lane-aligned nor foldable into a dense 128-lane
    # slab: load the full (t, 2d) row block and split in kernel.
    # TODO(synk): extremely wide unaligned rows (2*d*itemsize >> budget) would
    # need a second grid axis over the lane dim; not needed for this module.
    x2 = x.reshape(outer, two_d)
    t = _pick_row_tile(outer, two_d, itemsize, 8, budget, num_cores)
    out2 = pl.pallas_call(
        _glu_lastdim_kernel,
        out_shape=jax.ShapeDtypeStruct((outer, d), x.dtype),
        grid_spec=pltpu.PrefetchScalarGridSpec(
            num_scalar_prefetch=0,
            grid=(pl.cdiv(outer, t),),
            in_specs=[pl.BlockSpec((t, two_d), lambda i: (i, 0))],
            out_specs=pl.BlockSpec((t, d), lambda i: (i, 0)),
        ),
        compiler_params=cparams,
        cost_estimate=cost,
    )(x2)
    return out2.reshape(out_shape_nd)


def _glu_ref(x, dim=-1):
    a, g = jnp.split(x, 2, axis=dim)
    return a * jax.nn.sigmoid(g)


if __name__ == "__main__":
    key = jax.random.PRNGKey(0)
    x = jax.random.normal(key, (2, 4, 16, 16), dtype=jnp.float32)

    # Default module config: split along the last dim (W=16 -> halves of 8).
    # Exercises the folded lane-dense path.
    y = glu(x, dim=-1)
    jax.block_until_ready(y)
    assert y.shape == (2, 4, 16, 8), y.shape
    assert jnp.allclose(y, _glu_ref(x, dim=-1), atol=1e-5, rtol=1e-5), "dim=-1 mismatch"

    # Channel split (common PyTorch NCHW usage): d*H*W = 512 is lane aligned ->
    # unified BlockSpec-pre-split path (sublane = 8-aligned row tile).
    y1 = glu(x, dim=1)
    jax.block_until_ready(y1)
    assert y1.shape == (2, 2, 16, 16), y1.shape
    assert jnp.allclose(y1, _glu_ref(x, dim=1), atol=1e-5, rtol=1e-5), "dim=1 mismatch"

    # Unaligned, non-foldable last-dim split (d=5): simple fallback path.
    x3 = jax.random.normal(jax.random.PRNGKey(1), (3, 4, 10), dtype=jnp.float32)
    y3 = glu(x3, dim=-1)
    jax.block_until_ready(y3)
    assert y3.shape == (3, 4, 5), y3.shape
    assert jnp.allclose(y3, _glu_ref(x3, dim=-1), atol=1e-5, rtol=1e-5), "fallback mismatch"

    # Unaligned channel split (d=3, inner=35): squeezed 4-D fallback path.
    x4 = jax.random.normal(jax.random.PRNGKey(2), (2, 6, 5, 7), dtype=jnp.float32)
    y4 = glu(x4, dim=1)
    jax.block_until_ready(y4)
    assert y4.shape == (2, 3, 5, 7), y4.shape
    assert jnp.allclose(y4, _glu_ref(x4, dim=1), atol=1e-5, rtol=1e-5), "4-D fallback mismatch"

    print("KERNEL_OK")
</pallas_src>

<mosaic_0001>
module attributes {stable_mosaic.version = 11 : i64} {
  func.func @_glu_folded_kernel(%arg0: i32, %arg1: memref<16x128xf32, #tpu.memory_space<vmem>>, %arg2: memref<16x64xf32, #tpu.memory_space<vmem>>) attributes {dimension_semantics = [#tpu.dimension_semantics<parallel>], iteration_bounds = array<i64: 1>, scalar_prefetch = 0 : i64, scratch_operands = 0 : i64, tpu.core_type = #tpu.core_type<tc>, window_params = [{transform_indices = @transform_0, window_bounds = array<i64: 16, 128>}, {transform_indices = @transform_1, window_bounds = array<i64: 16, 64>}]} {
    %c0 = arith.constant 0 : index
    %c0_0 = arith.constant 0 : index
    %0 = vector.load %arg1[%c0, %c0_0] : memref<16x128xf32, #tpu.memory_space<vmem>>, vector<16x128xf32>
    %c120_i32 = arith.constant 120 : i32
    %1 = tpu.dynamic_rotate %0 by %c120_i32 dim 1 : vector<16x128xf32>, i32 -> vector<16x128xf32>
    %cst = arith.constant 5.000000e-01 : f32
    %2 = vector.broadcast %cst : f32 to vector<16x128xf32>
    %3 = arith.mulf %2, %1 : vector<16x128xf32>
    %4 = math.tanh %3 : vector<16x128xf32>
    %cst_1 = arith.constant 1.000000e+00 : f32
    %5 = vector.broadcast %cst_1 : f32 to vector<16x128xf32>
    %6 = arith.addf %4, %5 : vector<16x128xf32>
    %cst_2 = arith.constant 5.000000e-01 : f32
    %7 = vector.broadcast %cst_2 : f32 to vector<16x128xf32>
    %8 = arith.mulf %7, %6 : vector<16x128xf32>
    %9 = arith.mulf %0, %8 : vector<16x128xf32>
    %10 = tpu.iota {dimensions = array<i32: 1>} : vector<16x128xi32>
    %c120_i32_3 = arith.constant 120 : i32
    %11 = tpu.dynamic_rotate %9 by %c120_i32_3 dim 1 : vector<16x128xf32>, i32 -> vector<16x128xf32>
    %c32_i32 = arith.constant 32 : i32
    %c0_i32 = arith.constant 0 : i32
    %12 = arith.cmpi eq, %c32_i32, %c0_i32 : i32
    %c1_i32 = arith.constant 1 : i32
    %13 = arith.select %12, %c1_i32, %c32_i32 : i32
    %14 = vector.broadcast %13 : i32 to vector<16x128xi32>
    %15 = arith.remsi %10, %14 : vector<16x128xi32>
    %c0_i32_4 = arith.constant 0 : i32
    %16 = vector.broadcast %c0_i32_4 : i32 to vector<16x128xi32>
    %17 = arith.cmpi ne, %15, %16 : vector<16x128xi32>
    %c0_i32_5 = arith.constant 0 : i32
    %18 = vector.broadcast %c0_i32_5 : i32 to vector<16x128xi32>
    %19 = arith.cmpi slt, %15, %18 : vector<16x128xi32>
    %c0_i32_6 = arith.constant 0 : i32
    %20 = arith.cmpi slt, %13, %c0_i32_6 : i32
    %21 = vector.broadcast %20 : i1 to vector<16x128xi1>
    %22 = vector.broadcast %21 : vector<16x128xi1> to vector<16x128xi1>
    %23 = arith.xori %19, %22 : vector<16x128xi1>
    %24 = arith.andi %23, %17 : vector<16x128xi1>
    %25 = vector.broadcast %13 : i32 to vector<16x128xi32>
    %26 = arith.addi %15, %25 : vector<16x128xi32>
    %27 = arith.select %24, %26, %15 : vector<16x128xi1>, vector<16x128xi32>
    %c8_i32 = arith.constant 8 : i32
    %28 = vector.broadcast %c8_i32 : i32 to vector<16x128xi32>
    %29 = arith.cmpi sge, %27, %28 : vector<16x128xi32>
    %c16_i32 = arith.constant 16 : i32
    %30 = vector.broadcast %c16_i32 : i32 to vector<16x128xi32>
    %31 = arith.cmpi slt, %27, %30 : vector<16x128xi32>
    %32 = arith.andi %29, %31 : vector<16x128xi1>
    %33 = arith.select %32, %11, %9 : vector<16x128xi1>, vector<16x128xf32>
    %c112_i32 = arith.constant 112 : i32
    %34 = tpu.dynamic_rotate %33 by %c112_i32 dim 1 : vector<16x128xf32>, i32 -> vector<16x128xf32>
    %c64_i32 = arith.constant 64 : i32
    %c0_i32_7 = arith.constant 0 : i32
    %35 = arith.cmpi eq, %c64_i32, %c0_i32_7 : i32
    %c1_i32_8 = arith.constant 1 : i32
    %36 = arith.select %35, %c1_i32_8, %c64_i32 : i32
    %37 = vector.broadcast %36 : i32 to vector<16x128xi32>
    %38 = arith.remsi %10, %37 : vector<16x128xi32>
    %c0_i32_9 = arith.constant 0 : i32
    %39 = vector.broadcast %c0_i32_9 : i32 to vector<16x128xi32>
    %40 = arith.cmpi ne, %38, %39 : vector<16x128xi32>
    %c0_i32_10 = arith.constant 0 : i32
    %41 = vector.broadcast %c0_i32_10 : i32 to vector<16x128xi32>
    %42 = arith.cmpi slt, %38, %41 : vector<16x128xi32>
    %c0_i32_11 = arith.constant 0 : i32
    %43 = arith.cmpi slt, %36, %c0_i32_11 : i32
    %44 = vector.broadcast %43 : i1 to vector<16x128xi1>
    %45 = vector.broadcast %44 : vector<16x128xi1> to vector<16x128xi1>
    %46 = arith.xori %42, %45 : vector<16x128xi1>
    %47 = arith.andi %46, %40 : vector<16x128xi1>
    %48 = vector.broadcast %36 : i32 to vector<16x128xi32>
    %49 = arith.addi %38, %48 : vector<16x128xi32>
    %50 = arith.select %47, %49, %38 : vector<16x128xi1>, vector<16x128xi32>
    %c16_i32_12 = arith.constant 16 : i32
    %51 = vector.broadcast %c16_i32_12 : i32 to vector<16x128xi32>
    %52 = arith.cmpi sge, %50, %51 : vector<16x128xi32>
    %c32_i32_13 = arith.constant 32 : i32
    %53 = vector.broadcast %c32_i32_13 : i32 to vector<16x128xi32>
    %54 = arith.cmpi slt, %50, %53 : vector<16x128xi32>
    %55 = arith.andi %52, %54 : vector<16x128xi1>
    %56 = arith.select %55, %34, %33 : vector<16x128xi1>, vector<16x128xf32>
    %c96_i32 = arith.constant 96 : i32
    %57 = tpu.dynamic_rotate %56 by %c96_i32 dim 1 : vector<16x128xf32>, i32 -> vector<16x128xf32>
    %c128_i32 = arith.constant 128 : i32
    %c0_i32_14 = arith.constant 0 : i32
    %58 = arith.cmpi eq, %c128_i32, %c0_i32_14 : i32
    %c1_i32_15 = arith.constant 1 : i32
    %59 = arith.select %58, %c1_i32_15, %c128_i32 : i32
    %60 = vector.broadcast %59 : i32 to vector<16x128xi32>
    %61 = arith.remsi %10, %60 : vector<16x128xi32>
    %c0_i32_16 = arith.constant 0 : i32
    %62 = vector.broadcast %c0_i32_16 : i32 to vector<16x128xi32>
    %63 = arith.cmpi ne, %61, %62 : vector<16x128xi32>
    %c0_i32_17 = arith.constant 0 : i32
    %64 = vector.broadcast %c0_i32_17 : i32 to vector<16x128xi32>
    %65 = arith.cmpi slt, %61, %64 : vector<16x128xi32>
    %c0_i32_18 = arith.constant 0 : i32
    %66 = arith.cmpi slt, %59, %c0_i32_18 : i32
    %67 = vector.broadcast %66 : i1 to vector<16x128xi1>
    %68 = vector.broadcast %67 : vector<16x128xi1> to vector<16x128xi1>
    %69 = arith.xori %65, %68 : vector<16x128xi1>
    %70 = arith.andi %69, %63 : vector<16x128xi1>
    %71 = vector.broadcast %59 : i32 to vector<16x128xi32>
    %72 = arith.addi %61, %71 : vector<16x128xi32>
    %73 = arith.select %70, %72, %61 : vector<16x128xi1>, vector<16x128xi32>
    %c32_i32_19 = arith.constant 32 : i32
    %74 = vector.broadcast %c32_i32_19 : i32 to vector<16x128xi32>
    %75 = arith.cmpi sge, %73, %74 : vector<16x128xi32>
    %c64_i32_20 = arith.constant 64 : i32
    %76 = vector.broadcast %c64_i32_20 : i32 to vector<16x128xi32>
    %77 = arith.cmpi slt, %73, %76 : vector<16x128xi32>
    %78 = arith.andi %75, %77 : vector<16x128xi1>
    %79 = arith.select %78, %57, %56 : vector<16x128xi1>, vector<16x128xf32>
    %80 = vector.extract_strided_slice %79 {offsets = [0, 0], sizes = [16, 64], strides = [1, 1]} : vector<16x128xf32> to vector<16x64xf32>
    %c0_21 = arith.constant 0 : index
    %c0_22 = arith.constant 0 : index
    %81 = vector.load %arg2[%c0_21, %c0_22] : memref<16x64xf32, #tpu.memory_space<vmem>>, vector<16x64xf32>
    tpu.vector_store %arg2[%c0_21, %c0_22], %80 {strides = array<i32>} : memref<16x64xf32, #tpu.memory_space<vmem>>, vector<16x64xf32>,
    return
  }
  func.func @transform_0(%arg0: i32) -> (i32, i32) {
    %c0_i32 = arith.constant 0 : i32
    %c0_i32_0 = arith.constant 0 : i32
    return %arg0, %c0_i32 : i32, i32
  }
  func.func @transform_1(%arg0: i32) -> (i32, i32) {
    %c0_i32 = arith.constant 0 : i32
    %c0_i32_0 = arith.constant 0 : i32
    return %arg0, %c0_i32 : i32, i32
  }
}

</mosaic_0001>

<llo_original>
// kernel: glu.1
$region0: #{glu.1}
  #allocation0 [shape = 'u32[]', space=smem, size = 0x4, offset = 0x4, fixed_abs, tag = 'smem constant byte address 0x4 - core index']
  #allocation1 [shape = 'u32[144,128]{1,0:T(1,128)}', space=vmem, size = 0x12000, scoped, tag = 'internal scratch']
  %s0 = inlined_call_operand.vmem [shape: f32[16,128], index: 0, kind: input, shape index: {}]
  %s1 = inlined_call_operand.vmem [shape: f32[16,64], index: 1, kind: output, shape index: {}]
  %s2 = sld [smem:[#allocation0]]
  $region14: #{glu.1} parent=0
    _
  %s4 = ssub.s32 1, %s2
  %s5 = scalar_select 0, %s4, %s2
  // Predicated region
  $region2: #{glu.1} parent=0 // pred_check
    _
  $region3: #{glu.1} parent=0 // pred_check_branch
    %7 = sbr.rel (0) target = $region5
  $region4: #{glu.1} parent=0 // pred_region
    _
  $region5: #{glu.1} parent=0 // pred_fallthru
    _
  %v8 = vld [vmem:[%s0] sm:$0xff]
  %v9 = vld [vmem:[%s0 + $0x8] sm:$0xff]
  %10 = vrot.lane.b32.xlu0 %v8, 120
  %v11 = vpop.permute.xlu0 %10
  %12 = vrot.lane.b32.xlu0 %v9, 120
  %v13 = vpop.permute.xlu0 %12
  %v14 = vmul.f32 %v11, 0.5
  %v15 = vmul.f32 %v13, 0.5
  %v16 = vtanh.pop %v14
  %v17 = vtanh.pop %v15
  %v18 = vadd.f32 %v16, 1.0
  %v19 = vadd.f32 %v17, 1.0
  %v20 = vmul.f32 %v18, 0.5
  %v21 = vmul.f32 %v19, 0.5
  %v22 = vmul.f32 %v8, %v20
  %v23 = vmul.f32 %v9, %v21
  %v24 = vlaneseq
  %v25 = vand.u32 %v24, 127
  %26 = vrot.lane.b32.xlu0 %v22, 120
  %v27 = vpop.permute.xlu0 %26
  %28 = vrot.lane.b32.xlu0 %v23, 120
  %v29 = vpop.permute.xlu0 %28
  %vm30 = vcmp.lt.s32.totalorder %v25, 0
  %v31 = vsub.s32 0, %v25
  %v32 = vsel %vm30, %v31, %v25
  %v33 = vshrl.u32 %v32, 5
  %v34 = vand.u32 %v32, 31
  %v35 = vsub.s32 0, %v34
  %v36 = vsel %vm30, %v35, %v34
  %vm37 = vcmp.ne.s32.totalorder %v36, 0
  %vm38 = vcmp.lt.s32.totalorder %v36, 0
  %vm39 = vmand %vm38, %vm37
  %v40 = vadd.s32 %v36, 32
  %v41 = vsel %vm39, %v40, %v36
  %vm42 = vcmp.ge.s32.totalorder %v41, 8
  %vm43 = vcmp.lt.s32.totalorder %v41, 16
  %vm44 = vmand %vm42, %vm43
  %v45 = vsel %vm44, %v27, %v22
  %v46 = vsel %vm44, %v29, %v23
  %47 = vrot.lane.b32.xlu0 %v45, 112
  %v48 = vpop.permute.xlu0 %47
  %49 = vrot.lane.b32.xlu0 %v46, 112
  %v50 = vpop.permute.xlu0 %49
  %vm51 = vcmp.lt.s32.totalorder %v25, 0
  %v52 = vsub.s32 0, %v25
  %v53 = vsel %vm51, %v52, %v25
  %v54 = vshrl.u32 %v53, 6
  %v55 = vand.u32 %v53, 63
  %v56 = vsub.s32 0, %v55
  %v57 = vsel %vm51, %v56, %v55
  %vm58 = vcmp.ne.s32.totalorder %v57, 0
  %vm59 = vcmp.lt.s32.totalorder %v57, 0
  %vm60 = vmand %vm59, %vm58
  %v61 = vadd.s32 %v57, 64
  %v62 = vsel %vm60, %v61, %v57
  %vm63 = vcmp.ge.s32.totalorder %v62, 16
  %vm64 = vcmp.lt.s32.totalorder %v62, 32
  %vm65 = vmand %vm63, %vm64
  %v66 = vsel %vm65, %v48, %v45
  %v67 = vsel %vm65, %v50, %v46
  %68 = vrot.lane.b32.xlu0 %v66, 96
  %v69 = vpop.permute.xlu0 %68
  %70 = vrot.lane.b32.xlu0 %v67, 96
  %v71 = vpop.permute.xlu0 %70
  %vm72 = vcmp.lt.s32.totalorder %v25, 0
  %v73 = vsub.s32 0, %v25
  %v74 = vsel %vm72, %v73, %v25
  %v75 = vshrl.u32 %v74, 7
  %v76 = vand.u32 %v74, 127
  %v77 = vsub.s32 0, %v76
  %v78 = vsel %vm72, %v77, %v76
  %vm79 = vcmp.ne.s32.totalorder %v78, 0
  %vm80 = vcmp.lt.s32.totalorder %v78, 0
  %vm81 = vmand %vm80, %vm79
  %v82 = vadd.s32 %v78, 128
  %v83 = vsel %vm81, %v82, %v78
  %vm84 = vcmp.ge.s32.totalorder %v83, 32
  %vm85 = vcmp.lt.s32.totalorder %v83, 64
  %vm86 = vmand %vm84, %vm85
  %v87 = vsel %vm86, %v69, %v66
  %v88 = vsel %vm86, %v71, %v67
  %vm89 = vcmask 523264
  %90 = vst.msk [vmem:[%s1] sm:$0xff] %vm89, %v87
  %91 = vst.msk [vmem:[%s1 + $0x8] sm:$0xff] %vm89, %v88
  // Predicated region
  $region6: #{glu.1} parent=0 // pred_check
    _
  $region7: #{glu.1} parent=0 // pred_check_branch
    %93 = sbr.rel (0) target = $region9
  $region8: #{glu.1} parent=0 // pred_region
    _
  $region9: #{glu.1} parent=0 // pred_fallthru
    _
  // Predicated region
  $region10: #{glu.1} parent=0 // pred_check
    _
  $region11: #{glu.1} parent=0 // pred_check_branch
    %95 = sbr.rel (0) target = $region13
  $region12: #{glu.1} parent=0 // pred_region
    _
  $region13: #{glu.1} parent=0 // pred_fallthru
    _

</llo_original>
